<compile_context>
chip_gen: v5e
topology: v5e:2x2
jax: 0.10.0
libtpu: 0.0.40
codegen_flags: <defaults>
</compile_context>

<pallas_src>
import jax
import jax.numpy as jnp
from jax.experimental import pallas as pl
from jax.experimental.pallas import tpu as pltpu


# ---------------------------------------------------------------------------
# Kernels
# ---------------------------------------------------------------------------

def _diff_half_kernel(x_ref, o_ref):
    """In-place variant.

    x_ref: (Bb, 2, C_half, T)   -- [q ; r]
    o_ref: (Bb, 1, C_half, T)   -- the r half of the output buffer, which is
                                   aliased onto the input (input_output_aliases)
    Only q - r is written; the q half of the output is never touched and keeps
    the input's q values.
    """
    o_ref[...] = x_ref[:, 0:1, :, :] - x_ref[:, 1:2, :, :]


def _diff_full_kernel(x_ref, o_ref):
    """Out-of-place variant: write both halves (q passthrough + q - r)."""
    q = x_ref[:, 0:1, :, :]
    o_ref[:, 0:1, :, :] = q
    o_ref[:, 1:2, :, :] = q - x_ref[:, 1:2, :, :]


# ---------------------------------------------------------------------------
# Tiling heuristics
# ---------------------------------------------------------------------------

def _sublane_pack(itemsize):
    # f32 -> 8 sublanes / vreg, bf16 -> 16, int8/fp8 -> 32
    return max(8, 32 // itemsize)


def _choose_tiling(B, C_half, hw, itemsize, *, target_step_bytes,
                   vmem_block_budget):
    """Pick (batch_block Bb, hw_tile) for the (B, 2, C_half, hw) layout.

    Per grid step the pipeline holds (double-buffered):
        in  block: (Bb, 2, C_half, hw_tile)
        out block: (Bb, 1, C_half, hw_tile)
    with the channel extent padded to the sublane pack in VMEM.
    """
    pack = _sublane_pack(itemsize)
    c_pad = -(-C_half // pack) * pack

    def vmem_footprint(bb, t):            # double-buffered in + out blocks
        return 2 * (2 + 1) * bb * c_pad * t * itemsize

    def step_read_bytes(bb, t):           # HBM bytes read per grid step
        return 2 * bb * C_half * t * itemsize

    if hw % 128 == 0:
        cands = [t for t in range(128, hw + 1, 128) if hw % t == 0]
    else:
        cands = [hw]                       # full-extent lane block (always legal)

    fitting = [t for t in cands if vmem_footprint(1, t) <= vmem_block_budget]
    if not fitting:
        fitting = [cands[0]]
    # Smallest tile that already reaches the bytes/step target (keeps grid
    # depth for pipelining); otherwise the biggest tile that fits VMEM.
    reaching = [t for t in fitting if step_read_bytes(1, t) >= target_step_bytes]
    hw_tile = min(reaching) if reaching else max(fitting)
    n_tiles = hw // hw_tile

    # Small-C case: one full-width row is still tiny -> block several batch
    # rows per step so the ~0.35 us/step overhead is amortized.
    bb = 1
    if n_tiles == 1 and step_read_bytes(1, hw_tile) < target_step_bytes:
        for d in sorted((d for d in range(1, B + 1) if B % d == 0), reverse=True):
            if (vmem_footprint(d, hw_tile) <= vmem_block_budget
                    and step_read_bytes(d, hw_tile) <= 2 * target_step_bytes):
                bb = d
                break

    # Keep >= 2 grid steps when the problem allows it so both v7x TensorCores
    # get work (no-op on single-core v5e/v6e).
    if (B // bb) * n_tiles < 2 and B >= 2:
        bb = max(d for d in range(1, B // 2 + 1) if B % d == 0)

    return bb, hw_tile


# ---------------------------------------------------------------------------
# Wrapper
# ---------------------------------------------------------------------------

def get_difference(x, *, in_place=True, target_step_bytes=4 << 20,
                   vmem_block_budget=32 << 20, vmem_limit_bytes=48 << 20):
    """x: (B, C, H, W), C even. Returns concat([q, q - r], channel)."""
    B, C, H, W = x.shape
    assert C % 2 == 0, "channel count must be even"
    C_half = C // 2
    hw = H * W
    itemsize = jnp.dtype(x.dtype).itemsize

    # Free, contiguous reshape: q/r split on a leading size-2 axis so each half
    # is a full sublane-aligned slab for any C / dtype.
    x4 = x.reshape(B, 2, C_half, hw)

    # Unaligned H*W: full-extent block if it fits the VMEM budget, else pad the
    # lane dim up to a multiple of 128 (keeps lane-dense, unmasked stores).
    pad = 0
    if hw % 128 != 0:
        pack = _sublane_pack(itemsize)
        c_pad = -(-C_half // pack) * pack
        if 2 * 3 * c_pad * hw * itemsize > vmem_block_budget:
            pad = (-hw) % 128
            x4 = jnp.pad(x4, ((0, 0), (0, 0), (0, 0), (0, pad)))
    hw_eff = hw + pad

    bb, hw_tile = _choose_tiling(
        B, C_half, hw_eff, itemsize,
        target_step_bytes=target_step_bytes,
        vmem_block_budget=vmem_block_budget)
    grid = (B // bb, hw_eff // hw_tile)

    in_spec = pl.BlockSpec((bb, 2, C_half, hw_tile),
                           lambda b, t: (b, 0, 0, t))
    out_shape = jax.ShapeDtypeStruct((B, 2, C_half, hw_eff), x.dtype)
    compiler_params = pltpu.CompilerParams(
        dimension_semantics=("parallel", "parallel"),
        vmem_limit_bytes=vmem_limit_bytes,
    )

    if in_place:
        # Output buffer IS the input (alias); only the q - r half is written.
        out4 = pl.pallas_call(
            _diff_half_kernel,
            out_shape=out_shape,
            grid=grid,
            in_specs=[in_spec],
            out_specs=pl.BlockSpec((bb, 1, C_half, hw_tile),
                                   lambda b, t: (b, 1, 0, t)),
            input_output_aliases={0: 0},
            compiler_params=compiler_params,
        )(x4)
    else:
        out4 = pl.pallas_call(
            _diff_full_kernel,
            out_shape=out_shape,
            grid=grid,
            in_specs=[in_spec],
            out_specs=pl.BlockSpec((bb, 2, C_half, hw_tile),
                                   lambda b, t: (b, 0, 0, t)),
            compiler_params=compiler_params,
        )(x4)

    if pad:
        out4 = out4[..., :hw]
    return out4.reshape(B, C, H, W)


def _reference(x):
    c_half = x.shape[1] // 2
    q = x[:, :c_half]
    r = x[:, c_half:]
    return jnp.concatenate([q, q - r], axis=1)


if __name__ == "__main__":
    key = jax.random.PRNGKey(0)
    # small shape consistent with the module: batch=2, channels=8 (q/r = 4/4),
    # spatial 16x16  (H*W = 256 -> lane-dense, 128-aligned tiles)
    x = jax.random.normal(key, (2, 8, 16, 16), dtype=jnp.float32)

    ref = _reference(x)  # compute before the kernel (alias path may donate x4)

    out_inplace = jax.block_until_ready(get_difference(x, in_place=True))
    out_copy = jax.block_until_ready(get_difference(x, in_place=False))

    assert out_inplace.shape == (2, 8, 16, 16)
    assert out_copy.shape == (2, 8, 16, 16)
    assert jnp.allclose(out_inplace, ref, atol=1e-6, rtol=1e-6)
    assert jnp.allclose(out_copy, ref, atol=1e-6, rtol=1e-6)

    print("KERNEL_OK")
</pallas_src>

<mosaic_0001>
module attributes {stable_mosaic.version = 11 : i64} {
  func.func @_diff_half_kernel(%arg0: i32, %arg1: i32, %arg2: memref<1x2x4x256xf32, #tpu.memory_space<vmem>>, %arg3: memref<1x1x4x256xf32, #tpu.memory_space<vmem>>) attributes {dimension_semantics = [#tpu.dimension_semantics<parallel>, #tpu.dimension_semantics<parallel>], iteration_bounds = array<i64: 2, 1>, scalar_prefetch = 0 : i64, scratch_operands = 0 : i64, tpu.core_type = #tpu.core_type<tc>, window_params = [{transform_indices = @transform_0, window_bounds = array<i64: 1, 2, 4, 256>}, {transform_indices = @transform_1, window_bounds = array<i64: 1, 1, 4, 256>}]} {
    %c0 = arith.constant 0 : index
    %c0_0 = arith.constant 0 : index
    %c0_1 = arith.constant 0 : index
    %c0_2 = arith.constant 0 : index
    %0 = vector.load %arg2[%c0, %c0_0, %c0_1, %c0_2] : memref<1x2x4x256xf32, #tpu.memory_space<vmem>>, vector<1x1x4x256xf32>
    %c0_3 = arith.constant 0 : index
    %c1 = arith.constant 1 : index
    %c0_4 = arith.constant 0 : index
    %c0_5 = arith.constant 0 : index
    %1 = vector.load %arg2[%c0_3, %c1, %c0_4, %c0_5] : memref<1x2x4x256xf32, #tpu.memory_space<vmem>>, vector<1x1x4x256xf32>
    %2 = arith.subf %0, %1 : vector<1x1x4x256xf32>
    %c0_6 = arith.constant 0 : index
    %c0_7 = arith.constant 0 : index
    %c0_8 = arith.constant 0 : index
    %c0_9 = arith.constant 0 : index
    %3 = vector.load %arg3[%c0_6, %c0_7, %c0_8, %c0_9] : memref<1x1x4x256xf32, #tpu.memory_space<vmem>>, vector<1x1x4x256xf32>
    tpu.vector_store %arg3[%c0_6, %c0_7, %c0_8, %c0_9], %2 {strides = array<i32>} : memref<1x1x4x256xf32, #tpu.memory_space<vmem>>, vector<1x1x4x256xf32>,
    return
  }
  func.func @transform_0(%arg0: i32, %arg1: i32) -> (i32, i32, i32, i32) {
    %c0_i32 = arith.constant 0 : i32
    %c0_i32_0 = arith.constant 0 : i32
    %c0_i32_1 = arith.constant 0 : i32
    return %arg0, %c0_i32, %c0_i32_0, %arg1 : i32, i32, i32, i32
  }
  func.func @transform_1(%arg0: i32, %arg1: i32) -> (i32, i32, i32, i32) {
    %c1_i32 = arith.constant 1 : i32
    %c0_i32 = arith.constant 0 : i32
    %c0_i32_0 = arith.constant 0 : i32
    return %arg0, %c1_i32, %c0_i32, %arg1 : i32, i32, i32, i32
  }
}

</mosaic_0001>

<llo_original>
// kernel: tpu_custom_call.1
$region0: #{tpu_custom_call.1}
  #allocation0 [shape = 'u32[]', space=smem, size = 0x4, offset = 0x4, fixed_abs, tag = 'smem constant byte address 0x4 - core index']
  #allocation1 [shape = 'u32[72,128]{1,0:T(1,128)}', space=vmem, size = 0x9000, scoped, tag = 'internal scratch']
  %s0 = inlined_call_operand.hbm [shape: f32[2,2,4,256], index: 0, kind: input, shape index: {}, may-alias: {0,1}]
  %s1 = inlined_call_operand.hbm [shape: f32[2,2,4,256], index: 1, kind: output, shape index: {}, may-alias: {0,1}]
  %s2 = sld [smem:[#allocation0]]
  $region41: #{tpu_custom_call.1} parent=0
    _
  %s4 = ssub.s32 1, %s2
  %s5 = scalar_select 0, %s4, %s2
  $region1: #{tpu_custom_call.1} parent=0
    #allocation2 [shape = 'u8[16384]{0}', space=vmem, size = 0x4000, scoped, tag = 'input window, operand 0']
    #allocation3 [shape = 's32[2]{0}', space=sflag, size = 0x8, scoped, tag = 'scoped memory for tpu_custom_call.1']
    #allocation4 [shape = 's32[2]{0}', space=sflag, size = 0x8, scoped, tag = 'scoped memory for tpu_custom_call.1']
    #allocation5 [shape = 'u8[8192]{0}', space=vmem, size = 0x2000, scoped, tag = 'output window, operand 0']
    %6 = vsyncpa [#allocation3], 0
    %s7 = scalar_lea.sflag [#allocation3], 1
    %8 = vsyncpa %s7, 0
    %9 = vsyncpa [#allocation4], 0
    %s10 = scalar_lea.sflag [#allocation4], 1
    %11 = vsyncpa %s10, 0
    loop: start=0, step=1, limit=4
    $region2: #{tpu_custom_call.1} parent=1 // loop_pre_header
      _
    $region3: #{tpu_custom_call.1} parent=1 // loop_header
      %s13 = sphi 0, %s17
      %p14 = scmp.ge.s32.totalorder %s13, 4
      %s20 = sphi 0, %s32
      %s21 = sphi 0, %s28
      %s22 = sphi 0, %s20
      %s23 = sphi 0, %s21
      %s24 = sphi 0, %s22
      %s25 = sphi 0, %s23
      %s37 = sphi 0, %s39
      %s40 = sphi 0, %s37
      %s41 = sphi 0, %s40
      %s57 = sphi 0, %s41
      %s65 = sphi 0, %s67
      %s68 = sphi 0, %s65
      %s69 = sphi 0, %s68
      %s85 = sphi 0, %s69
    $region4: #{tpu_custom_call.1} parent=1 // loop_header_branch
      %16 = sbr.rel (%p14) target = $region8
    $region5: #{tpu_custom_call.1} parent=1 // loop_body
      %s18 = ssub.s32 %s13, 1
      %s19 = ssub.s32 %s13, 2
      %s26 = sadd.s32 1, %s21
      %p27 = scmp.ge.s32.totalorder %s26, 1
      %s28 = scalar_select %p27, 0, %s26
      %s29 = sadd.s32 1, %s20
      %s30 = scalar_select %p27, %s29, %s20
      %p31 = scmp.ge.s32.totalorder %s30, 2
      %s32 = scalar_select %p31, 0, %s30
      %s33 = ssub.s32 %s20, %s32
      %s34 = ssub.s32 %s21, %s28
      %s35 = sor.u32 %s33, %s34
      %p36 = scmp.eq.s32.totalorder %s35, 0
      %s38 = sadd.s32 %s37, 1
      %s39 = scalar_select %p36, %s37, %s38
      %p42 = pneg %p36
      %p43 = scmp.eq.s32.totalorder %s13, 1
      %p44 = por %p42, %p43
      %p45 = scmp.ne.s32.totalorder %s37, %s40
      %p46 = scmp.eq.s32.totalorder %s13, 0
      %p47 = por %p45, %p46
      %p48 = scmp.ne.s32.totalorder %s37, %s40
      %p49 = scmp.eq.s32.totalorder %s18, 1
      %p50 = por %p48, %p49
      %p51 = scmp.ne.s32.totalorder %s40, %s41
      %p52 = scmp.eq.s32.totalorder %s18, 0
      %p53 = por %p51, %p52
      %p54 = scmp.ne.s32.totalorder %s40, %s41
      %p55 = scmp.eq.s32.totalorder %s19, 1
      %p56 = por %p54, %p55
      %p58 = scmp.ne.s32.totalorder %s41, %s57
      %p59 = scmp.eq.s32.totalorder %s19, 0
      %p60 = por %p58, %p59
      %s61 = ssub.s32 %s20, %s32
      %s62 = ssub.s32 %s21, %s28
      %s63 = sor.u32 %s61, %s62
      %p64 = scmp.eq.s32.totalorder %s63, 0
      %s66 = sadd.s32 %s65, 1
      %s67 = scalar_select %p64, %s65, %s66
      %p70 = pneg %p64
      %p71 = scmp.eq.s32.totalorder %s13, 1
      %p72 = por %p70, %p71
      %p73 = scmp.ne.s32.totalorder %s65, %s68
      %p74 = scmp.eq.s32.totalorder %s13, 0
      %p75 = por %p73, %p74
      %p76 = scmp.ne.s32.totalorder %s65, %s68
      %p77 = scmp.eq.s32.totalorder %s18, 1
      %p78 = por %p76, %p77
      %p79 = scmp.ne.s32.totalorder %s68, %s69
      %p80 = scmp.eq.s32.totalorder %s18, 0
      %p81 = por %p79, %p80
      %p82 = scmp.ne.s32.totalorder %s68, %s69
      %p83 = scmp.eq.s32.totalorder %s19, 1
      %p84 = por %p82, %p83
      %p86 = scmp.ne.s32.totalorder %s69, %s85
      %p87 = scmp.eq.s32.totalorder %s19, 0
      %p88 = por %p86, %p87
      %p89 = scmp.le.s32.totalorder 1, %s13
      %p90 = scmp.lt.s32.totalorder %s13, 3
      %p91 = pnand %p89, %p90
      %p92 = pneg %p91
      // Predicated region
      $region9: #{tpu_custom_call.1} parent=5 // pred_check
        _
      $region10: #{tpu_custom_call.1} parent=5 // pred_check_branch
        %94 = sbr.rel (%p91) target = $region12
      $region11: #{tpu_custom_call.1} parent=5 // pred_region
        %s95 = ssub.s32 %s13, 1
      $region12: #{tpu_custom_call.1} parent=5 // pred_fallthru
        _
      %p96 = scmp.lt.s32.totalorder %s13, 2
      // Predicated region
      $region13: #{tpu_custom_call.1} parent=5 // pred_check
        %p97 = pneg %p96
      $region14: #{tpu_custom_call.1} parent=5 // pred_check_branch
        %99 = sbr.rel (%p97) target = $region16
      $region15: #{tpu_custom_call.1} parent=5 // pred_region
        // Predicated region
        $region17: #{tpu_custom_call.1} parent=15 // pred_check
          %p100 = pneg %p47
        $region18: #{tpu_custom_call.1} parent=15 // pred_check_branch
          %102 = sbr.rel (%p100) target = $region20
        $region19: #{tpu_custom_call.1} parent=15 // pred_region
          %s103 = sand.u32 %s37, 1
          %s104 = scalar_lea.sflag [#allocation3], %s103
          %s105 = sand.u32 %s37, 1
          %s106 = smul.addr %s105, 16
          %s107 = scalar_lea.vmem [#allocation2], %s106
          %s108 = smul.u32 2, %s21
          %110 = vsyncadd %s104, 0
          %s111 = smul.addr %s20, 4
          %s112 = sadd.s32 %s108, %s111
          %s113 = smul.addr %s112, 4
          %s114 = scalar_lea.hbm %s0, %s113
          %s115 = sshll.u32 %s114, 4
          %s116 = int_to_ptr.hbm [resolvable:$true] %s115
          %s117 = sshll.u32 %s107, 4
          %s118 = int_to_ptr.vmem [resolvable:$true] %s117
          %123 = dma.hbm_to_vmem [thread:$0]  %s116, 256, %s118, %s104, 128, 128, 8
        $region20: #{tpu_custom_call.1} parent=15 // pred_fallthru
          _
      $region16: #{tpu_custom_call.1} parent=5 // pred_fallthru
        _
      %p124 = scmp.le.s32.totalorder 1, %s13
      %p125 = scmp.lt.s32.totalorder %s13, 3
      %p126 = pnand %p124, %p125
      %p127 = pneg %p126
      // Predicated region
      $region21: #{tpu_custom_call.1} parent=5 // pred_check
        _
      $region22: #{tpu_custom_call.1} parent=5 // pred_check_branch
        %129 = sbr.rel (%p126) target = $region24
      $region23: #{tpu_custom_call.1} parent=5 // pred_region
        %s130 = ssub.s32 %s13, 1
        %s131 = sand.u32 %s40, 1
        %s132 = scalar_lea.sflag [#allocation3], %s131
        %s133 = sand.u32 %s40, 1
        %s134 = smul.addr %s133, 16
        %s135 = scalar_lea.vmem [#allocation2], %s134
        // Predicated region
        $region25: #{tpu_custom_call.1} parent=23 // pred_check
          %p136 = pneg %p53
        $region26: #{tpu_custom_call.1} parent=23 // pred_check_branch
          %138 = sbr.rel (%p136) target = $region28
        $region27: #{tpu_custom_call.1} parent=23 // pred_region
          %140 = dma.done %s132, 256
        $region28: #{tpu_custom_call.1} parent=23 // pred_fallthru
          _
        %s141 = sand.u32 %s40, 1
        %s142 = scalar_lea.sflag [#allocation3], %s141
        %s143 = sand.u32 %s40, 1
        %s144 = smul.addr %s143, 16
        %s145 = scalar_lea.vmem [#allocation2], %s144
        %p146 = pneg %p53
        %p147 = pneg %p50
        %p148 = pneg %p81
        %p149 = pneg %p78
        %s150 = sand.u32 %s68, 1
        %s151 = scalar_lea.sflag [#allocation4], %s150
        %s152 = sand.u32 %s68, 1
        %s153 = smul.addr %s152, 8
        %s154 = scalar_lea.vmem [#allocation5], %s153
        %s155 = smul.u32 2, %s23
        %s156 = smul.u32 2, %s23
        %v157 = vld [vmem:[%s135] sm:$0xff]
        %s158 = scalar_lea.vmem %s135, 8 [#allocation2]
        %v159 = vld [vmem:[%s158] sm:$0xff]
        %v160 = vsub.f32 %v157, %v159
        %161 = vst [vmem:[%s154] sm:$0xff] %v160
        %s162 = sand.u32 %s68, 1
        %s163 = scalar_lea.sflag [#allocation4], %s162
        %s164 = sand.u32 %s68, 1
        %s165 = smul.addr %s164, 8
        %s166 = scalar_lea.vmem [#allocation5], %s165
        // Predicated region
        $region29: #{tpu_custom_call.1} parent=23 // pred_check
          %p167 = pneg %p78
        $region30: #{tpu_custom_call.1} parent=23 // pred_check_branch
          %169 = sbr.rel (%p167) target = $region32
        $region31: #{tpu_custom_call.1} parent=23 // pred_region
          %s170 = smul.u32 2, %s23
          %172 = vsyncadd %s163, 0
          %s173 = sadd.s32 %s170, 2
          %s174 = smul.addr %s22, 4
          %s175 = sadd.s32 %s173, %s174
          %s176 = smul.addr %s175, 4
          %s177 = scalar_lea.hbm %s1, %s176
          %s179 = sshll.u32 %s166, 4
          %s180 = int_to_ptr.vmem [resolvable:$true] %s179
          %s181 = sshll.u32 %s177, 4
          %s182 = int_to_ptr.hbm [resolvable:$true] %s181
          %184 = dma.vmem_to_hbm [thread:$0]  %s180, 128, %s182, %s163
        $region32: #{tpu_custom_call.1} parent=23 // pred_fallthru
          _
      $region24: #{tpu_custom_call.1} parent=5 // pred_fallthru
        _
      %p185 = scmp.le.s32.totalorder 2, %s13
      // Predicated region
      $region33: #{tpu_custom_call.1} parent=5 // pred_check
        %p186 = pneg %p185
      $region34: #{tpu_custom_call.1} parent=5 // pred_check_branch
        %188 = sbr.rel (%p186) target = $region36
      $region35: #{tpu_custom_call.1} parent=5 // pred_region
        %s189 = ssub.s32 %s13, 2
        // Predicated region
        $region37: #{tpu_custom_call.1} parent=35 // pred_check
          %p190 = pneg %p84
        $region38: #{tpu_custom_call.1} parent=35 // pred_check_branch
          %192 = sbr.rel (%p190) target = $region40
        $region39: #{tpu_custom_call.1} parent=35 // pred_region
          %s193 = sand.u32 %s69, 1
          %s194 = scalar_lea.sflag [#allocation4], %s193
          %s195 = sand.u32 %s69, 1
          %s196 = smul.addr %s195, 8
          %s197 = scalar_lea.vmem [#allocation5], %s196
          %199 = dma.done %s194, 128
        $region40: #{tpu_custom_call.1} parent=35 // pred_fallthru
          _
      $region36: #{tpu_custom_call.1} parent=5 // pred_fallthru
        _
    $region6: #{tpu_custom_call.1} parent=1 // loop_footer
      %s17 = sadd.s32 1, %s13
    $region7: #{tpu_custom_call.1} parent=1 // loop_footer_branch
      %12 = sbr.rel target = $region3
    $region8: #{tpu_custom_call.1} parent=1 // loop_exit
      _
    %200 = vsyncpa [#allocation3], 1
    %s201 = scalar_lea.sflag [#allocation3], 1
    %202 = vsyncpa %s201, 1
    %203 = vsyncpa [#allocation4], 1
    %s204 = scalar_lea.sflag [#allocation4], 1
    %205 = vsyncpa %s204, 1

</llo_original>
